<compile_context>
chip_gen: v6e
topology: v6e:2x2x1
jax: 0.10.0
libtpu: 0.0.40
codegen_flags: <defaults>
</compile_context>

<pallas_src>
import jax
import jax.numpy as jnp
from jax.experimental import pallas as pl
from jax.experimental.pallas import tpu as pltpu

# AGCL / ASLSingleLabel hyperparameters (module defaults).
S = 30.0
M = 0.5
NOISE_MUL = 1.0
GAMMA_POS = 0.0   # exploited as compile-time constant (weight == 1 on target class)
GAMMA_NEG = 4.0   # exploited as compile-time constant (integer power -> two squarings)
EPS = 0.1


def agcl_kernel(cosine_ref, noise_ref, target_ref, mlist_ref, loss_ref):
    # Cast inside the kernel (keeps HBM traffic at the input width for bf16 inputs).
    x = cosine_ref[...].astype(jnp.float32)            # (T, C)
    nz = noise_ref[...].astype(jnp.float32)            # (T, C)
    ml = mlist_ref[...].astype(jnp.float32)            # (1, C)
    tgt = target_ref[...]                               # (T, 1) int32
    T, C = x.shape

    # ---- AGCL margin adjustment -------------------------------------------
    m_max = jnp.max(ml)                                  # m_list.max()
    x = x - (NOISE_MUL * jnp.abs(nz) / m_max) * ml
    classes = jax.lax.broadcasted_iota(jnp.int32, (T, C), 1)
    is_target = classes == tgt                           # one-hot mask (scatter_ equiv.)
    x = jnp.where(is_target, x - M, x)
    x = S * x

    # ---- ASLSingleLabel -----------------------------------------------------
    # log-softmax along the class (lane) axis; exp(z) is computed once and
    # reused for both the normalizer and the probabilities.
    row_max = jnp.max(x, axis=-1, keepdims=True)
    z = x - row_max
    e = jnp.exp(z)                                       # the only (T, C) transcendental
    ssum = jnp.sum(e, axis=-1, keepdims=True)            # (T, 1)
    log_preds = z - jnp.log(ssum)
    xs_pos = e * (1.0 / ssum)                            # softmax probabilities

    # Asymmetric focusing weight with compile-time gammas:
    #   target class:      base**gamma_pos = base**0 = 1
    #   non-target class:  base = xs_pos, gamma_neg = 4 -> xs_pos**4
    p2 = xs_pos * xs_pos
    w4 = p2 * p2
    wlp = jnp.where(is_target, log_preds, log_preds * w4)   # log_preds * asymmetric_w

    # Fused label smoothing + class reduction:
    #   targets_classes = onehot*(1-eps) + eps/C
    #   per_row = -(1-eps)*log_preds[target] - (eps/C)*sum(wlp)
    lp_t = jnp.sum(jnp.where(is_target, log_preds, 0.0), axis=-1, keepdims=True)
    sum_all = jnp.sum(wlp, axis=-1, keepdims=True)
    per_row = -(1.0 - EPS) * lp_t - (EPS / C) * sum_all      # (T, 1)

    loss_ref[...] = per_row.astype(loss_ref.dtype)


def _pick_tile_n(n, c, itemsize):
    # Budget: 2 inputs (cosine, noise) double-buffered at input width plus
    # ~8 f32 (tile, C) in-kernel temporaries; stay well under the VMEM limit.
    bytes_per_row = 2 * 2 * c * itemsize + 8 * c * 4
    tile = (24 * 1024 * 1024) // max(bytes_per_row, 1)
    tile = max(8, min(1024, (tile // 8) * 8))
    return n if n <= tile else tile


def agcl_loss(cosine, target, noise, m_list):
    """AGCL forward (train_cls=False): ASLSingleLabel(s * margin_adjusted_cosine, target).

    cosine: (N, C) float, target: (N,) int, noise: (N, C) Normal(0,1/3) samples
    clamped to [-1, 1], m_list: (C,) float.  Returns scalar float32 (mean loss).
    """
    N, C = cosine.shape
    tile_n = _pick_tile_n(N, C, cosine.dtype.itemsize)
    grid = (pl.cdiv(N, tile_n),)

    tgt_col = target.astype(jnp.int32).reshape(N, 1)
    mlist_row = m_list.astype(jnp.float32).reshape(1, C)

    per_row = pl.pallas_call(
        agcl_kernel,
        out_shape=jax.ShapeDtypeStruct((N, 1), jnp.float32),
        grid=grid,
        in_specs=[
            pl.BlockSpec((tile_n, C), lambda i: (i, 0)),   # cosine tile
            pl.BlockSpec((tile_n, C), lambda i: (i, 0)),   # noise tile
            pl.BlockSpec((tile_n, 1), lambda i: (i, 0)),   # target column
            pl.BlockSpec((1, C), lambda i: (0, 0)),        # m_list row (resident)
        ],
        out_specs=pl.BlockSpec((tile_n, 1), lambda i: (i, 0)),
        compiler_params=pltpu.CompilerParams(
            dimension_semantics=("parallel",),             # megacore-splittable on v7x
            vmem_limit_bytes=48 * 1024 * 1024,
        ),
    )(cosine, noise, tgt_col, mlist_row)

    # reduction='mean' — tiny (N,) reduction left to XLA, keeps the grid axis parallel.
    return jnp.mean(per_row)


def _reference(cosine, target, noise, m_list):
    """Pure-JAX re-implementation of the PyTorch AGCL forward (train_cls=False)."""
    N, C = cosine.shape
    m_list = m_list.astype(jnp.float32)
    index = jax.nn.one_hot(target, C, dtype=jnp.float32)
    cos = cosine.astype(jnp.float32) - NOISE_MUL * jnp.abs(noise) / jnp.max(m_list) * m_list
    output = jnp.where(index > 0, cos - M, cos)
    x = S * output
    log_preds = jax.nn.log_softmax(x, axis=-1)
    targets = index
    anti = 1.0 - targets
    xs_pos = jnp.exp(log_preds)
    xs_neg = 1.0 - xs_pos
    base = 1.0 - xs_pos * targets - xs_neg * anti
    gamma = GAMMA_POS * targets + GAMMA_NEG * anti
    w = jnp.power(base, gamma)
    lp = log_preds * w
    tc = targets * (1.0 - EPS) + EPS / C
    loss = (-tc * lp).sum(axis=-1)
    return loss.mean()


if __name__ == "__main__":
    key = jax.random.PRNGKey(0)
    k1, k2, k3 = jax.random.split(key, 3)
    N, C = 8, 32

    cosine = jnp.tanh(jax.random.normal(k1, (N, C), dtype=jnp.float32))   # cosine-like values
    target = jax.random.randint(k2, (N,), 0, C, dtype=jnp.int32)
    # Normal(0, 1/3) samples clamped to [-1, 1] (the torch module samples these per
    # forward; generated once here, deterministically, and passed into the kernel).
    noise = jnp.clip(jax.random.normal(k3, (N, C), dtype=jnp.float32) / 3.0, -1.0, 1.0)
    # cls_num_list -> m_list = log(n).max() - log(n)
    cls_num_list = jnp.arange(1, C + 1, dtype=jnp.float32) * 10.0
    log_cls = jnp.log(cls_num_list)
    m_list = jnp.max(log_cls) - log_cls

    loss = agcl_loss(cosine, target, noise, m_list)
    jax.block_until_ready(loss)

    ref = _reference(cosine, target, noise, m_list)
    assert jnp.allclose(loss, ref, rtol=1e-4, atol=1e-5), (loss, ref)
    print("KERNEL_OK")
</pallas_src>

<mosaic_0001>
module attributes {stable_mosaic.version = 11 : i64} {
  func.func @agcl_kernel(%arg0: i32, %arg1: memref<8x32xf32, #tpu.memory_space<vmem>>, %arg2: memref<8x32xf32, #tpu.memory_space<vmem>>, %arg3: memref<8x1xi32, #tpu.memory_space<vmem>>, %arg4: memref<1x32xf32, #tpu.memory_space<vmem>>, %arg5: memref<8x1xf32, #tpu.memory_space<vmem>>) attributes {dimension_semantics = [#tpu.dimension_semantics<parallel>], iteration_bounds = array<i64: 1>, scalar_prefetch = 0 : i64, scratch_operands = 0 : i64, tpu.core_type = #tpu.core_type<tc>, window_params = [{transform_indices = @transform_0, window_bounds = array<i64: 8, 32>}, {transform_indices = @transform_1, window_bounds = array<i64: 8, 32>}, {transform_indices = @transform_2, window_bounds = array<i64: 8, 1>}, {pipeline_mode = #tpu.pipeline_mode<synchronous>, transform_indices = @transform_3, window_bounds = array<i64: 1, 32>}, {transform_indices = @transform_4, window_bounds = array<i64: 8, 1>}]} {
    %c0 = arith.constant 0 : index
    %c0_0 = arith.constant 0 : index
    %0 = vector.load %arg1[%c0, %c0_0] : memref<8x32xf32, #tpu.memory_space<vmem>>, vector<8x32xf32>
    %c0_1 = arith.constant 0 : index
    %c0_2 = arith.constant 0 : index
    %1 = vector.load %arg2[%c0_1, %c0_2] : memref<8x32xf32, #tpu.memory_space<vmem>>, vector<8x32xf32>
    %c0_3 = arith.constant 0 : index
    %c0_4 = arith.constant 0 : index
    %2 = vector.load %arg4[%c0_3, %c0_4] : memref<1x32xf32, #tpu.memory_space<vmem>>, vector<1x32xf32>
    %c0_5 = arith.constant 0 : index
    %c0_6 = arith.constant 0 : index
    %3 = vector.load %arg3[%c0_5, %c0_6] : memref<8x1xi32, #tpu.memory_space<vmem>>, vector<8x1xi32>
    %4 = vector.shape_cast %2 : vector<1x32xf32> to vector<1x1x32xf32>
    %cst = arith.constant dense<0xFF800000> : vector<1xf32>
    %5 = vector.multi_reduction <maximumf>, %4, %cst [1, 2] : vector<1x1x32xf32> to vector<1xf32>
    %6 = vector.shape_cast %5 : vector<1xf32> to vector<1x1x1xf32>
    %7 = vector.extract %6[0, 0, 0] : f32 from vector<1x1x1xf32>
    %8 = math.absf %1 : vector<8x32xf32>
    %cst_7 = arith.constant 1.000000e+00 : f32
    %9 = vector.broadcast %cst_7 : f32 to vector<8x32xf32>
    %10 = arith.mulf %9, %8 : vector<8x32xf32>
    %11 = vector.broadcast %7 : f32 to vector<8x32xf32>
    %12 = arith.divf %10, %11 : vector<8x32xf32>
    %13 = vector.broadcast %2 : vector<1x32xf32> to vector<8x32xf32>
    %14 = arith.mulf %12, %13 : vector<8x32xf32>
    %15 = arith.subf %0, %14 : vector<8x32xf32>
    %16 = tpu.iota {dimensions = array<i32: 1>} : vector<8x32xi32>
    %17 = vector.broadcast %3 : vector<8x1xi32> to vector<8x32xi32>
    %18 = arith.cmpi eq, %16, %17 : vector<8x32xi32>
    %cst_8 = arith.constant 5.000000e-01 : f32
    %19 = vector.broadcast %cst_8 : f32 to vector<8x32xf32>
    %20 = arith.subf %15, %19 : vector<8x32xf32>
    %21 = arith.select %18, %20, %15 : vector<8x32xi1>, vector<8x32xf32>
    %cst_9 = arith.constant 3.000000e+01 : f32
    %22 = vector.broadcast %cst_9 : f32 to vector<8x32xf32>
    %23 = arith.mulf %22, %21 : vector<8x32xf32>
    %cst_10 = arith.constant dense<0xFF800000> : vector<8xf32>
    %24 = vector.multi_reduction <maximumf>, %23, %cst_10 [1] : vector<8x32xf32> to vector<8xf32>
    %25 = vector.shape_cast %24 : vector<8xf32> to vector<8x1xf32>
    %26 = vector.broadcast %25 : vector<8x1xf32> to vector<8x32xf32>
    %27 = arith.subf %23, %26 : vector<8x32xf32>
    %28 = math.exp %27 : vector<8x32xf32>
    %cst_11 = arith.constant dense<0.000000e+00> : vector<8xf32>
    %29 = vector.multi_reduction <add>, %28, %cst_11 [1] : vector<8x32xf32> to vector<8xf32>
    %30 = vector.shape_cast %29 : vector<8xf32> to vector<8x1xf32>
    %31 = math.log %30 : vector<8x1xf32>
    %32 = vector.broadcast %31 : vector<8x1xf32> to vector<8x32xf32>
    %33 = arith.subf %27, %32 : vector<8x32xf32>
    %cst_12 = arith.constant 1.000000e+00 : f32
    %34 = vector.broadcast %cst_12 : f32 to vector<8x1xf32>
    %35 = arith.divf %34, %30 : vector<8x1xf32>
    %36 = vector.broadcast %35 : vector<8x1xf32> to vector<8x32xf32>
    %37 = arith.mulf %28, %36 : vector<8x32xf32>
    %38 = arith.mulf %37, %37 : vector<8x32xf32>
    %39 = arith.mulf %38, %38 : vector<8x32xf32>
    %40 = arith.mulf %33, %39 : vector<8x32xf32>
    %41 = arith.select %18, %33, %40 : vector<8x32xi1>, vector<8x32xf32>
    %cst_13 = arith.constant 0.000000e+00 : f32
    %42 = vector.broadcast %cst_13 : f32 to vector<8x32xf32>
    %43 = arith.select %18, %33, %42 : vector<8x32xi1>, vector<8x32xf32>
    %cst_14 = arith.constant dense<0.000000e+00> : vector<8xf32>
    %44 = vector.multi_reduction <add>, %43, %cst_14 [1] : vector<8x32xf32> to vector<8xf32>
    %45 = vector.shape_cast %44 : vector<8xf32> to vector<8x1xf32>
    %cst_15 = arith.constant dense<0.000000e+00> : vector<8xf32>
    %46 = vector.multi_reduction <add>, %41, %cst_15 [1] : vector<8x32xf32> to vector<8xf32>
    %47 = vector.shape_cast %46 : vector<8xf32> to vector<8x1xf32>
    %cst_16 = arith.constant -0.899999976 : f32
    %48 = vector.broadcast %cst_16 : f32 to vector<8x1xf32>
    %49 = arith.mulf %48, %45 : vector<8x1xf32>
    %cst_17 = arith.constant 3.125000e-03 : f32
    %50 = vector.broadcast %cst_17 : f32 to vector<8x1xf32>
    %51 = arith.mulf %50, %47 : vector<8x1xf32>
    %52 = arith.subf %49, %51 : vector<8x1xf32>
    %c0_18 = arith.constant 0 : index
    %c0_19 = arith.constant 0 : index
    %53 = vector.load %arg5[%c0_18, %c0_19] : memref<8x1xf32, #tpu.memory_space<vmem>>, vector<8x1xf32>
    tpu.vector_store %arg5[%c0_18, %c0_19], %52 {strides = array<i32>} : memref<8x1xf32, #tpu.memory_space<vmem>>, vector<8x1xf32>,
    return
  }
  func.func @transform_0(%arg0: i32) -> (i32, i32) {
    %c0_i32 = arith.constant 0 : i32
    %c0_i32_0 = arith.constant 0 : i32
    return %arg0, %c0_i32 : i32, i32
  }
  func.func @transform_1(%arg0: i32) -> (i32, i32) {
    %c0_i32 = arith.constant 0 : i32
    %c0_i32_0 = arith.constant 0 : i32
    return %arg0, %c0_i32 : i32, i32
  }
  func.func @transform_2(%arg0: i32) -> (i32, i32) {
    %c0_i32 = arith.constant 0 : i32
    %c0_i32_0 = arith.constant 0 : i32
    return %arg0, %c0_i32 : i32, i32
  }
  func.func @transform_3(%arg0: i32) -> (i32, i32) {
    %c0_i32 = arith.constant 0 : i32
    %c0_i32_0 = arith.constant 0 : i32
    %c0_i32_1 = arith.constant 0 : i32
    return %c0_i32, %c0_i32_0 : i32, i32
  }
  func.func @transform_4(%arg0: i32) -> (i32, i32) {
    %c0_i32 = arith.constant 0 : i32
    %c0_i32_0 = arith.constant 0 : i32
    return %arg0, %c0_i32 : i32, i32
  }
}

</mosaic_0001>

<llo_original>
// kernel: tpu_custom_call.1
$region0: #{tpu_custom_call.1}
  #allocation0 [shape = 'u32[]', space=smem, size = 0x4, offset = 0x4, fixed_abs, tag = 'smem constant byte address 0x4 - core index']
  #allocation1 [shape = 'u32[144,128]{1,0:T(1,128)}', space=vmem, size = 0x12000, scoped, tag = 'internal scratch']
  %s0 = inlined_call_operand.vmem [shape: f32[8,32], index: 0, kind: input, shape index: {}]
  %s1 = inlined_call_operand.hbm [shape: f32[8,32], index: 1, kind: input, shape index: {}]
  %s2 = inlined_call_operand.vmem [shape: s32[8,1], index: 2, kind: input, shape index: {}]
  %s3 = inlined_call_operand.vmem [shape: f32[1,32], index: 3, kind: input, shape index: {}]
  %s4 = inlined_call_operand.vmem [shape: f32[8,1], index: 4, kind: output, shape index: {}]
  %s5 = sld [smem:[#allocation0]]
  $region30: #{tpu_custom_call.1} parent=0
    _
  %s7 = ssub.s32 1, %s5
  %s8 = scalar_select 0, %s7, %s5
  $region1: #{tpu_custom_call.1} parent=0
    #allocation2 [shape = 'u8[4096]{0}', space=vmem, size = 0x1000, scoped, tag = 'input window, operand 1, single buffered']
    #allocation3 [shape = 's32[1]{0}', space=sflag, size = 0x4, scoped, tag = 'scoped memory for tpu_custom_call.1']
    %9 = vsyncpa [#allocation3], 0
    // Predicated region
    $region2: #{tpu_custom_call.1} parent=1 // pred_check
      _
    $region3: #{tpu_custom_call.1} parent=1 // pred_check_branch
      %11 = sbr.rel (0) target = $region5
    $region4: #{tpu_custom_call.1} parent=1 // pred_region
      _
    $region5: #{tpu_custom_call.1} parent=1 // pred_fallthru
      _
    // Predicated region
    $region6: #{tpu_custom_call.1} parent=1 // pred_check
      _
    $region7: #{tpu_custom_call.1} parent=1 // pred_check_branch
      %13 = sbr.rel (0) target = $region9
    $region8: #{tpu_custom_call.1} parent=1 // pred_region
      %s15 = ssub.s32 128, 128
      %16 = vsyncadd [#allocation3], %s15
      %s18 = sshll.u32 [#allocation2], 4
      %s19 = int_to_ptr.vmem [resolvable:$true] %s18
      %21 = dma.hbm_to_vmem [thread:$0]  %s1, 128, %s19, [#allocation3]
    $region9: #{tpu_custom_call.1} parent=1 // pred_fallthru
      _
    // Predicated region
    $region10: #{tpu_custom_call.1} parent=1 // pred_check
      _
    $region11: #{tpu_custom_call.1} parent=1 // pred_check_branch
      %23 = sbr.rel (0) target = $region13
    $region12: #{tpu_custom_call.1} parent=1 // pred_region
      _
    $region13: #{tpu_custom_call.1} parent=1 // pred_fallthru
      _
    // Predicated region
    $region14: #{tpu_custom_call.1} parent=1 // pred_check
      _
    $region15: #{tpu_custom_call.1} parent=1 // pred_check_branch
      %25 = sbr.rel (0) target = $region17
    $region16: #{tpu_custom_call.1} parent=1 // pred_region
      _
    $region17: #{tpu_custom_call.1} parent=1 // pred_fallthru
      _
    // Predicated region
    $region18: #{tpu_custom_call.1} parent=1 // pred_check
      _
    $region19: #{tpu_custom_call.1} parent=1 // pred_check_branch
      %27 = sbr.rel (0) target = $region21
    $region20: #{tpu_custom_call.1} parent=1 // pred_region
      %28 = dma.done [#allocation3], 128
    $region21: #{tpu_custom_call.1} parent=1 // pred_fallthru
      _
    %v29 = vld [vmem:[%s0] sm:$0xff]
    %v30 = vld [vmem:[#allocation2] sm:$0xff]
    %v31 = vld [vmem:[%s3] sm:$0x1]
    %v32 = vld [vmem:[%s2] sm:$0xff]
    %vm33 = vcmask 253952
    %v34 = vsel %vm33, %v31, -inf
    %35 = vmax.xlane.f32.xlu0 %v34
    %v36 = vpop.xlane.xlu0 %35
    %v37 = vrot.slane %v36, 4
    %v38 = vmax.f32 %v36, %v37
    %v39 = vrot.slane %v38, 2
    %v40 = vmax.f32 %v38, %v39
    %v41 = vrot.slane %v40, 1
    %v42 = vmax.f32 %v40, %v41
    %s43 = vtos %v42
    %v44 = vand.u32 2147483647, %v30
    %v45 = vstv %s43
    %v46 = vrcp.pop %v45
    %v47 = vmul.f32 %v44, %v46
    %v49 = vlaneseq
    %v50 = vshrl.u32 %v49, 7
    %v51 = vsub.s32 0, %v50
    %v52 = vrot.slane %v31, %v51
    %v54 = vmul.f32 %v47, %v52
    %v55 = vsub.f32 %v29, %v54
    %v56 = vlaneseq
    %v57 = vand.u32 %v56, 127
    %58 = vset.pattern.permute.xlu0 0
    %59 = vperm.xlu0 %58, %v32
    %v60 = vpop.permute.xlu0 %59
    %vm61 = vcmp.eq.s32.totalorder %v57, %v60
    %v62 = vsub.f32 %v55, 0.5
    %v63 = vsel %vm61, %v62, %v55
    %v64 = vmul.f32 %v63, 30.0
    %vm65 = vcmask 261120
    %v66 = vsel %vm65, %v64, -inf
    %67 = vmax.xlane.f32.xlu0 %v66
    %v68 = vpop.xlane.xlu0 %67
    %v69 = vsub.f32 %v64, %v68
    %v70 = vmul.f32 %v69, 1.442695
    %v71 = vpow.pop %v70
    %v72 = vsel %vm65, %v71, 0.0
    %73 = vadd.xlane.f32.xlu0 %v72
    %v74 = vpop.xlane.xlu0 %73
    %v75 = vlog2.pop %v74
    %v76 = vmul.f32 %v75, 0.6931472
    %v77 = vsub.f32 %v69, %v76
    %v78 = vrcp.pop %v74
    %v79 = vmul.f32 1.0, %v78
    %v80 = vmul.f32 %v71, %v79
    %v81 = vmul.f32 %v80, %v80
    %v82 = vmul.f32 %v81, %v81
    %v83 = vmul.f32 %v77, %v82
    %v84 = vsel %vm61, %v77, %v83
    %v85 = vsel %vm61, %v77, 0.0
    %v86 = vsel %vm65, %v85, 0.0
    %87 = vadd.xlane.f32.xlu0 %v86
    %v88 = vpop.xlane.xlu0 %87
    %v89 = vsel %vm65, %v84, 0.0
    %90 = vadd.xlane.f32.xlu0 %v89
    %v91 = vpop.xlane.xlu0 %90
    %v92 = vmul.f32 %v88, -0.9
    %v93 = vmul.f32 %v91, 0.003125
    %v94 = vsub.f32 %v92, %v93
    %vm95 = vcmask 7168
    %96 = vst.msk [vmem:[%s4] sm:$0xff] %vm95, %v94
    // Predicated region
    $region22: #{tpu_custom_call.1} parent=1 // pred_check
      _
    $region23: #{tpu_custom_call.1} parent=1 // pred_check_branch
      %98 = sbr.rel (0) target = $region25
    $region24: #{tpu_custom_call.1} parent=1 // pred_region
      _
    $region25: #{tpu_custom_call.1} parent=1 // pred_fallthru
      _
    // Predicated region
    $region26: #{tpu_custom_call.1} parent=1 // pred_check
      _
    $region27: #{tpu_custom_call.1} parent=1 // pred_check_branch
      %100 = sbr.rel (0) target = $region29
    $region28: #{tpu_custom_call.1} parent=1 // pred_region
      _
    $region29: #{tpu_custom_call.1} parent=1 // pred_fallthru
      _
    %101 = vsyncpa [#allocation3], 1

</llo_original>
